<compile_context>
chip_gen: v6e
topology: v6e:2x2x1
jax: 0.10.0
libtpu: 0.0.40
codegen_flags: <defaults>
</compile_context>

<pallas_src>
import jax
import jax.numpy as jnp
from jax.experimental import pallas as pl
from jax.experimental.pallas import tpu as pltpu

HIDDEN = 256


def _critic_kernel(sa_ref, w14_ref, b14_ref, w25_ref, b25_ref,
                   w36_ref, b36_ref, q_ref):
    f32 = jnp.float32
    wdt = w14_ref.dtype  # bfloat16 weight dtype

    def mm(x, w):
        # native MXU bf16 matmul, f32 accumulation
        return jnp.dot(x.astype(wdt), w, preferred_element_type=f32)

    sa = sa_ref[...]                                           # (B, in_dim) f32

    # ---- Layer 1, both heads fused along N: one (B,in)@(in,512) dot ----------
    hg1 = jnp.maximum(mm(sa, w14_ref[...]) + b14_ref[...], 0.0)   # (B, 512)
    h1 = hg1[:, :HIDDEN]                                          # Q1 hidden
    g1 = hg1[:, HIDDEN:]                                          # Q2 hidden

    # ---- Layer 2: separate matmuls, lane-aligned static views of w25/b25 -----
    h2 = jnp.maximum(mm(h1, w25_ref[:, :HIDDEN]) + b25_ref[:, :HIDDEN], 0.0)
    g2 = jnp.maximum(mm(g1, w25_ref[:, HIDDEN:]) + b25_ref[:, HIDDEN:], 0.0)

    # ---- Output: lane-concat h||g (256-lane boundary = pure placement), ------
    # ---- one (B,512)@(512,2) matmul against the block-diagonal w3/w6 ---------
    hg2 = jnp.concatenate([h2, g2], axis=1)                       # (B, 512)
    q_ref[...] = mm(hg2, w36_ref[...]) + b36_ref[...]             # (B, 2)


def critic_forward(state, action, params):
    """Returns (q1, q2), each (batch, 1) float32. `params` from pack_critic_params."""
    B = state.shape[0]
    sa = jnp.concatenate([state, action], axis=1)                 # (B, in_dim)
    in_dim = sa.shape[1]

    vmem = pl.BlockSpec(memory_space=pltpu.MemorySpace.VMEM)
    operands = (
        sa,
        params["w14"], params["b14"],
        params["w25"], params["b25"],
        params["w36_bd"], params["b36"],
    )

    flops = (2 * B * in_dim * 2 * HIDDEN          # fused layer 1
             + 2 * (2 * B * HIDDEN * HIDDEN)      # layer 2, two heads
             + 2 * B * (2 * HIDDEN) * 2)          # block-diag output projection
    bytes_accessed = (sum(int(x.size) * x.dtype.itemsize for x in operands)
                      + B * 2 * 4)

    q = pl.pallas_call(
        _critic_kernel,
        out_shape=jax.ShapeDtypeStruct((B, 2), jnp.float32),
        in_specs=[vmem] * len(operands),
        out_specs=vmem,
        cost_estimate=pl.CostEstimate(
            flops=flops, transcendentals=0, bytes_accessed=bytes_accessed),
    )(*operands)
    return q[:, 0:1], q[:, 1:2]


def init_critic_params(key, state_dim, action_dim, hidden=HIDDEN):
    """Raw float32 params mimicking PyTorch nn.Linear init.
    Weights stored pre-transposed as (in_features, out_features); biases (1, out)."""
    in_dim = state_dim + action_dim
    dims = [
        ("w1", "b1", in_dim, hidden),
        ("w2", "b2", hidden, hidden),
        ("w3", "b3", hidden, 1),
        ("w4", "b4", in_dim, hidden),
        ("w5", "b5", hidden, hidden),
        ("w6", "b6", hidden, 1),
    ]
    params = {}
    keys = jax.random.split(key, 2 * len(dims))
    for i, (wn, bn, fan_in, fan_out) in enumerate(dims):
        bound = 1.0 / (fan_in ** 0.5)
        params[wn] = jax.random.uniform(
            keys[2 * i], (fan_in, fan_out), jnp.float32, -bound, bound)
        params[bn] = jax.random.uniform(
            keys[2 * i + 1], (1, fan_out), jnp.float32, -bound, bound)
    return params


def pack_critic_params(p, weight_dtype=jnp.bfloat16):
    """One-time repack of raw params into the fused / block-diagonal / bf16 layout."""
    # Layer 1: heads fused along N.
    w14 = jnp.concatenate([p["w1"], p["w4"]], axis=1)            # (in_dim, 512)
    b14 = jnp.concatenate([p["b1"], p["b4"]], axis=1)            # (1, 512)
    # Layer 2: single packed buffer, sliced in-kernel with lane-aligned views.
    w25 = jnp.concatenate([p["w2"], p["w5"]], axis=1)            # (256, 512)
    b25 = jnp.concatenate([p["b2"], p["b5"]], axis=1)            # (1, 512)
    # Output: block-diagonal (512, 2): col 0 <- w3 on rows 0..255, col 1 <- w6 on 256..511.
    w36_bd = jnp.zeros((2 * HIDDEN, 2), jnp.float32)
    w36_bd = w36_bd.at[:HIDDEN, 0:1].set(p["w3"])
    w36_bd = w36_bd.at[HIDDEN:, 1:2].set(p["w6"])
    b36 = jnp.concatenate([p["b3"], p["b6"]], axis=1)            # (1, 2)
    return {
        "w14": w14.astype(weight_dtype),
        "b14": b14.astype(jnp.float32),
        "w25": w25.astype(weight_dtype),
        "b25": b25.astype(jnp.float32),
        "w36_bd": w36_bd.astype(weight_dtype),
        "b36": b36.astype(jnp.float32),
    }


def critic_forward_matched_ref(state, action, packed):
    """Pure-JAX reference with the same dtype/fusion structure as the kernel."""
    f32 = jnp.float32
    wdt = packed["w14"].dtype

    def mm(x, w):
        return jnp.dot(x.astype(wdt), w, preferred_element_type=f32)

    sa = jnp.concatenate([state, action], axis=1)
    hg1 = jnp.maximum(mm(sa, packed["w14"]) + packed["b14"], 0.0)
    h1, g1 = hg1[:, :HIDDEN], hg1[:, HIDDEN:]
    h2 = jnp.maximum(mm(h1, packed["w25"][:, :HIDDEN]) + packed["b25"][:, :HIDDEN], 0.0)
    g2 = jnp.maximum(mm(g1, packed["w25"][:, HIDDEN:]) + packed["b25"][:, HIDDEN:], 0.0)
    q = mm(jnp.concatenate([h2, g2], axis=1), packed["w36_bd"]) + packed["b36"]
    return q[:, 0:1], q[:, 1:2]


def critic_forward_f32_ref(state, action, raw):
    """Full-precision reference of the original PyTorch module semantics."""
    sa = jnp.concatenate([state, action], axis=1)
    h = jnp.maximum(sa @ raw["w1"] + raw["b1"], 0.0)
    h = jnp.maximum(h @ raw["w2"] + raw["b2"], 0.0)
    q1 = h @ raw["w3"] + raw["b3"]
    g = jnp.maximum(sa @ raw["w4"] + raw["b4"], 0.0)
    g = jnp.maximum(g @ raw["w5"] + raw["b5"], 0.0)
    q2 = g @ raw["w6"] + raw["b6"]
    return q1, q2


if __name__ == "__main__":
    key = jax.random.PRNGKey(0)
    k_params, k_state, k_action = jax.random.split(key, 3)

    batch, state_dim, action_dim = 8, 16, 4
    raw = init_critic_params(k_params, state_dim, action_dim)
    packed = pack_critic_params(raw)

    state = jax.random.normal(k_state, (batch, state_dim), jnp.float32)
    action = jax.random.normal(k_action, (batch, action_dim), jnp.float32)

    fwd = jax.jit(critic_forward)
    q1, q2 = fwd(state, action, packed)
    q1 = jax.block_until_ready(q1)
    q2 = jax.block_until_ready(q2)
    assert q1.shape == (batch, 1) and q2.shape == (batch, 1)

    # Tight check: same math structure / dtypes as the kernel.
    r1, r2 = critic_forward_matched_ref(state, action, packed)
    assert jnp.allclose(q1, r1, atol=1e-2, rtol=1e-2)
    assert jnp.allclose(q2, r2, atol=1e-2, rtol=1e-2)

    # Loose check: fidelity to the original float32 module (bf16 weight quant).
    f1, f2 = critic_forward_f32_ref(state, action, raw)
    assert jnp.allclose(q1, f1, atol=1e-1, rtol=1e-1)
    assert jnp.allclose(q2, f2, atol=1e-1, rtol=1e-1)

    print("KERNEL_OK")
</pallas_src>

<mosaic_0001>
module attributes {stable_mosaic.version = 11 : i64} {
  func.func @_critic_kernel(%arg0: memref<8x20xf32, #tpu.memory_space<vmem>>, %arg1: memref<20x512xbf16, #tpu.memory_space<vmem>>, %arg2: memref<1x512xf32, #tpu.memory_space<vmem>>, %arg3: memref<256x512xbf16, #tpu.memory_space<vmem>>, %arg4: memref<1x512xf32, #tpu.memory_space<vmem>>, %arg5: memref<512x2xbf16, #tpu.memory_space<vmem>>, %arg6: memref<1x2xf32, #tpu.memory_space<vmem>>, %arg7: memref<8x2xf32, #tpu.memory_space<vmem>>) attributes {dimension_semantics = [], scalar_prefetch = 0 : i64, scratch_operands = 0 : i64, tpu.core_type = #tpu.core_type<tc>} {
    %c0 = arith.constant 0 : index
    %c0_0 = arith.constant 0 : index
    %0 = vector.load %arg0[%c0, %c0_0] : memref<8x20xf32, #tpu.memory_space<vmem>>, vector<8x20xf32>
    %c0_1 = arith.constant 0 : index
    %c0_2 = arith.constant 0 : index
    %1 = vector.load %arg1[%c0_1, %c0_2] : memref<20x512xbf16, #tpu.memory_space<vmem>>, vector<20x512xbf16>
    %2 = arith.truncf %0 : vector<8x20xf32> to vector<8x20xbf16>
    %cst = arith.constant dense<0.000000e+00> : vector<8x512xf32>
    %3 = tpu.matmul %2, %1, %cst {dimension_numbers = #tpu.dot_dimension_numbers<[1], [0], [0], [1], [0, 0, 1, 1], [], []>} : vector<8x20xbf16>, vector<20x512xbf16>, vector<8x512xf32> -> vector<8x512xf32>
    %c0_3 = arith.constant 0 : index
    %c0_4 = arith.constant 0 : index
    %4 = vector.load %arg2[%c0_3, %c0_4] : memref<1x512xf32, #tpu.memory_space<vmem>>, vector<1x512xf32>
    %5 = vector.broadcast %4 : vector<1x512xf32> to vector<8x512xf32>
    %6 = arith.addf %3, %5 : vector<8x512xf32>
    %cst_5 = arith.constant 0.000000e+00 : f32
    %7 = vector.broadcast %cst_5 : f32 to vector<8x512xf32>
    %8 = arith.maximumf %6, %7 : vector<8x512xf32>
    %9 = vector.extract_strided_slice %8 {offsets = [0, 0], sizes = [8, 256], strides = [1, 1]} : vector<8x512xf32> to vector<8x256xf32>
    %10 = vector.extract_strided_slice %8 {offsets = [0, 256], sizes = [8, 256], strides = [1, 1]} : vector<8x512xf32> to vector<8x256xf32>
    %c0_6 = arith.constant 0 : index
    %c0_7 = arith.constant 0 : index
    %11 = vector.load %arg3[%c0_6, %c0_7] : memref<256x512xbf16, #tpu.memory_space<vmem>>, vector<256x256xbf16>
    %12 = arith.truncf %9 : vector<8x256xf32> to vector<8x256xbf16>
    %cst_8 = arith.constant dense<0.000000e+00> : vector<8x256xf32>
    %13 = tpu.matmul %12, %11, %cst_8 {dimension_numbers = #tpu.dot_dimension_numbers<[1], [0], [0], [1], [0, 0, 1, 1], [], []>} : vector<8x256xbf16>, vector<256x256xbf16>, vector<8x256xf32> -> vector<8x256xf32>
    %c0_9 = arith.constant 0 : index
    %c0_10 = arith.constant 0 : index
    %14 = vector.load %arg4[%c0_9, %c0_10] : memref<1x512xf32, #tpu.memory_space<vmem>>, vector<1x256xf32>
    %15 = vector.broadcast %14 : vector<1x256xf32> to vector<8x256xf32>
    %16 = arith.addf %13, %15 : vector<8x256xf32>
    %cst_11 = arith.constant 0.000000e+00 : f32
    %17 = vector.broadcast %cst_11 : f32 to vector<8x256xf32>
    %18 = arith.maximumf %16, %17 : vector<8x256xf32>
    %c0_12 = arith.constant 0 : index
    %c256 = arith.constant 256 : index
    %19 = vector.load %arg3[%c0_12, %c256] : memref<256x512xbf16, #tpu.memory_space<vmem>>, vector<256x256xbf16>
    %20 = arith.truncf %10 : vector<8x256xf32> to vector<8x256xbf16>
    %cst_13 = arith.constant dense<0.000000e+00> : vector<8x256xf32>
    %21 = tpu.matmul %20, %19, %cst_13 {dimension_numbers = #tpu.dot_dimension_numbers<[1], [0], [0], [1], [0, 0, 1, 1], [], []>} : vector<8x256xbf16>, vector<256x256xbf16>, vector<8x256xf32> -> vector<8x256xf32>
    %c0_14 = arith.constant 0 : index
    %c256_15 = arith.constant 256 : index
    %22 = vector.load %arg4[%c0_14, %c256_15] : memref<1x512xf32, #tpu.memory_space<vmem>>, vector<1x256xf32>
    %23 = vector.broadcast %22 : vector<1x256xf32> to vector<8x256xf32>
    %24 = arith.addf %21, %23 : vector<8x256xf32>
    %cst_16 = arith.constant 0.000000e+00 : f32
    %25 = vector.broadcast %cst_16 : f32 to vector<8x256xf32>
    %26 = arith.maximumf %24, %25 : vector<8x256xf32>
    %27 = tpu.concatenate %18, %26 in 1 : vector<8x256xf32>, vector<8x256xf32> -> vector<8x512xf32>
    %c0_17 = arith.constant 0 : index
    %c0_18 = arith.constant 0 : index
    %28 = vector.load %arg5[%c0_17, %c0_18] : memref<512x2xbf16, #tpu.memory_space<vmem>>, vector<512x2xbf16>
    %29 = arith.truncf %27 : vector<8x512xf32> to vector<8x512xbf16>
    %cst_19 = arith.constant dense<0.000000e+00> : vector<8x2xf32>
    %30 = tpu.matmul %29, %28, %cst_19 {dimension_numbers = #tpu.dot_dimension_numbers<[1], [0], [0], [1], [0, 0, 1, 1], [], []>} : vector<8x512xbf16>, vector<512x2xbf16>, vector<8x2xf32> -> vector<8x2xf32>
    %c0_20 = arith.constant 0 : index
    %c0_21 = arith.constant 0 : index
    %31 = vector.load %arg6[%c0_20, %c0_21] : memref<1x2xf32, #tpu.memory_space<vmem>>, vector<1x2xf32>
    %32 = vector.broadcast %31 : vector<1x2xf32> to vector<8x2xf32>
    %33 = arith.addf %30, %32 : vector<8x2xf32>
    %c0_22 = arith.constant 0 : index
    %c0_23 = arith.constant 0 : index
    %34 = vector.load %arg7[%c0_22, %c0_23] : memref<8x2xf32, #tpu.memory_space<vmem>>, vector<8x2xf32>
    tpu.vector_store %arg7[%c0_22, %c0_23], %33 {strides = array<i32>} : memref<8x2xf32, #tpu.memory_space<vmem>>, vector<8x2xf32>,
    return
  }
}

</mosaic_0001>

<llo_original>
// kernel: critic_forward.1
$region0: #{critic_forward.1}
  #allocation0 [shape = 'u32[]', space=smem, size = 0x4, offset = 0x4, fixed_abs, tag = 'smem constant byte address 0x4 - core index']
  #allocation1 [shape = 'u32[144,128]{1,0:T(1,128)}', space=vmem, size = 0x12000, scoped, tag = 'internal scratch']
  %s0 = inlined_call_operand.vmem [shape: f32[8,20], index: 0, kind: input, shape index: {}]
  %s1 = inlined_call_operand.vmem [shape: bf16[20,512], index: 1, kind: input, shape index: {}]
  %s2 = inlined_call_operand.vmem [shape: f32[1,512], index: 2, kind: input, shape index: {}]
  %s3 = inlined_call_operand.hbm [shape: bf16[256,512], index: 3, kind: input, shape index: {}]
  %s4 = inlined_call_operand.vmem [shape: f32[1,512], index: 4, kind: input, shape index: {}]
  %s5 = inlined_call_operand.vmem [shape: bf16[512,2], index: 5, kind: input, shape index: {}]
  %s6 = inlined_call_operand.vmem [shape: f32[1,2], index: 6, kind: input, shape index: {}]
  %s7 = inlined_call_operand.vmem [shape: f32[8,2], index: 7, kind: output, shape index: {}]
  %s8 = sld [smem:[#allocation0]]
  $region42: #{critic_forward.1} parent=0
    _
  %s10 = ssub.s32 1, %s8
  %s11 = scalar_select 0, %s10, %s8
  $region1: #{critic_forward.1} parent=0
    #allocation2 [shape = 'u8[262144]{0}', space=vmem, size = 0x40000, scoped, tag = 'input window, operand 3, single buffered']
    #allocation3 [shape = 's32[1]{0}', space=sflag, size = 0x4, scoped, tag = 'scoped memory for critic_forward.1']
    %12 = vsyncpa [#allocation3], 0
    // Predicated region
    $region2: #{critic_forward.1} parent=1 // pred_check
      _
    $region3: #{critic_forward.1} parent=1 // pred_check_branch
      %14 = sbr.rel (0) target = $region5
    $region4: #{critic_forward.1} parent=1 // pred_region
      _
    $region5: #{critic_forward.1} parent=1 // pred_fallthru
      _
    // Predicated region
    $region6: #{critic_forward.1} parent=1 // pred_check
      _
    $region7: #{critic_forward.1} parent=1 // pred_check_branch
      %16 = sbr.rel (0) target = $region9
    $region8: #{critic_forward.1} parent=1 // pred_region
      _
    $region9: #{critic_forward.1} parent=1 // pred_fallthru
      _
    // Predicated region
    $region10: #{critic_forward.1} parent=1 // pred_check
      _
    $region11: #{critic_forward.1} parent=1 // pred_check_branch
      %18 = sbr.rel (0) target = $region13
    $region12: #{critic_forward.1} parent=1 // pred_region
      _
    $region13: #{critic_forward.1} parent=1 // pred_fallthru
      _
    // Predicated region
    $region14: #{critic_forward.1} parent=1 // pred_check
      _
    $region15: #{critic_forward.1} parent=1 // pred_check_branch
      %20 = sbr.rel (0) target = $region17
    $region16: #{critic_forward.1} parent=1 // pred_region
      %s22 = ssub.s32 8192, 8192
      %23 = vsyncadd [#allocation3], %s22
      %s24 = sshll.u32 [#allocation2], 4
      %s25 = int_to_ptr.vmem [resolvable:$true] %s24
      %30 = dma.hbm_to_vmem [thread:$0]  %s3, 8192, %s25, [#allocation3], 256, 256, 16
    $region17: #{critic_forward.1} parent=1 // pred_fallthru
      _
    // Predicated region
    $region18: #{critic_forward.1} parent=1 // pred_check
      _
    $region19: #{critic_forward.1} parent=1 // pred_check_branch
      %32 = sbr.rel (0) target = $region21
    $region20: #{critic_forward.1} parent=1 // pred_region
      _
    $region21: #{critic_forward.1} parent=1 // pred_fallthru
      _
    // Predicated region
    $region22: #{critic_forward.1} parent=1 // pred_check
      _
    $region23: #{critic_forward.1} parent=1 // pred_check_branch
      %34 = sbr.rel (0) target = $region25
    $region24: #{critic_forward.1} parent=1 // pred_region
      _
    $region25: #{critic_forward.1} parent=1 // pred_fallthru
      _
    // Predicated region
    $region26: #{critic_forward.1} parent=1 // pred_check
      _
    $region27: #{critic_forward.1} parent=1 // pred_check_branch
      %36 = sbr.rel (0) target = $region29
    $region28: #{critic_forward.1} parent=1 // pred_region
      _
    $region29: #{critic_forward.1} parent=1 // pred_fallthru
      _
    // Predicated region
    $region30: #{critic_forward.1} parent=1 // pred_check
      _
    $region31: #{critic_forward.1} parent=1 // pred_check_branch
      %38 = sbr.rel (0) target = $region33
    $region32: #{critic_forward.1} parent=1 // pred_region
      %39 = dma.done [#allocation3], 8192
    $region33: #{critic_forward.1} parent=1 // pred_fallthru
      _
    %v41 = vld [vmem:[%s0] sm:$0xff]
    %v42 = vld [vmem:[%s1] sm:$0xff]
    %v43 = vld [vmem:[%s1 + $0x8] sm:$0xff]
    %v44 = vld [vmem:[%s1 + $0x10] sm:$0xff]
    %v45 = vld [vmem:[%s1 + $0x18] sm:$0xff]
    %v46 = vld [vmem:[%s1 + $0x20] sm:$0x33]
    %v47 = vld [vmem:[%s1 + $0x28] sm:$0x33]
    %v48 = vpack.c.bf16 %v41, %v41
    %v49 = vld [vmem:[%s2] sm:$0xf]
    %v51 = vlaneseq
    %v52 = vshrl.u32 %v51, 7
    %v53 = vsub.s32 0, %v52
    %v54 = vrot.slane %v49, %v53
    %v55 = vlaneseq
    %v56 = vshrl.u32 %v55, 7
    %v57 = vsub.s32 1, %v56
    %v58 = vrot.slane %v49, %v57
    %v59 = vlaneseq
    %v60 = vshrl.u32 %v59, 7
    %v61 = vsub.s32 2, %v60
    %v62 = vrot.slane %v49, %v61
    %v63 = vlaneseq
    %v64 = vshrl.u32 %v63, 7
    %v65 = vsub.s32 3, %v64
    %v66 = vrot.slane %v49, %v65
    %v77 = vunpack.c.l.b16 %v42
    %v78 = vunpack.c.h.b16 %v42
    %v79 = vunpack.c.l.b16 %v43
    %v80 = vunpack.c.h.b16 %v43
    %v81 = vunpack.c.l.b16 %v44
    %v82 = vunpack.c.h.b16 %v44
    %v83 = vunpack.c.l.b16 %v45
    %v84 = vunpack.c.h.b16 %v45
    %v85 = vunpack.c.l.b16 %v46
    %v86 = vunpack.c.h.b16 %v46
    %v87 = vunpack.c.l.b16 %v47
    %v88 = vunpack.c.h.b16 %v47
    %v89 = vpack.c.b16 %v81, %v77
    %v90 = vpack.c.b16 %v82, %v78
    %v91 = vpack.c.b16 %v83, %v79
    %v92 = vpack.c.b16 %v84, %v80
    %v93 = vpack.c.b16 %v85, %v85
    %v94 = vpack.c.b16 %v86, %v86
    %v95 = vpack.c.b16 %v87, %v87
    %v96 = vpack.c.b16 %v88, %v88
    %vm101 = vcmask 162816
    %v103 = vsel %vm101, %v48, 0
    %vm105 = vcmask 1041408
    %v107 = vsel %vm105, %v93, 0
    %v110 = vsel %vm105, %v94, 0
    %v113 = vsel %vm105, %v95, 0
    %v116 = vsel %vm105, %v96, 0
    %118 = vmatprep.subr.bf16.mxu0 0
    %119 = vmatpush1.bf16.msra.mxu0 0
    %120 = vmatprep.subr.bf16.mxu0 0
    %121 = vmatpush1.bf16.msra.mxu0 0
    %122 = vmatprep.subr.bf16.mxu0 0
    %123 = vmatpush1.bf16.msra.mxu0 0
    %124 = vmatprep.subr.bf16.mxu0 0
    %125 = vmatpush1.bf16.msra.mxu0 0
    %126 = vmatprep.subr.bf16.mxu0 0
    %127 = vmatpush1.bf16.msra.mxu0 0
    %128 = vmatprep.subr.bf16.mxu0 0
    %129 = vmatpush1.bf16.msra.mxu0 0
    %130 = vmatprep.subr.bf16.mxu0 %v110
    %131 = vmatpush1.bf16.msra.mxu0 %v107
    %132 = vmatprep.subr.bf16.mxu0 %v90
    %133 = vmatpush1.bf16.msra.mxu0 %v89
    %134 = vmatprep.subr.bf16.mxu0 0
    %135 = vmatpush2.bf16.msra.mxu0 0
    %136 = vmatprep.subr.bf16.mxu0 0
    %137 = vmatpush2.bf16.msra.mxu0 0
    %138 = vmatprep.subr.bf16.mxu0 0
    %139 = vmatpush2.bf16.msra.mxu0 0
    %140 = vmatprep.subr.bf16.mxu0 0
    %141 = vmatpush2.bf16.msra.mxu0 0
    %142 = vmatprep.subr.bf16.mxu0 0
    %143 = vmatpush2.bf16.msra.mxu0 0
    %144 = vmatprep.subr.bf16.mxu0 0
    %145 = vmatpush2.bf16.msra.mxu0 0
    %146 = vmatprep.subr.bf16.mxu0 0
    %147 = vmatpush2.bf16.msra.mxu0 0
    %148 = vmatprep.subr.bf16.mxu0 0
    %149 = vmatpush2.bf16.msra.mxu0 0
    %150 = vmatprep.mubr.bf16.mxu0 0
    %151 = vmatmul.mubr.bf16.gmra.mxu0 %v103
    %v152 = vpop.f32.mrf.mxu0
    %v153 = vadd.f32 %v54, %v152
    %v154 = vpop.f32.mrf.mxu0
    %v155 = vadd.f32 %v58, %v154
    %v156 = vpop.f32.mrf.mxu0
    %v157 = vpop.f32.mrf.mxu0
    %158 = vdwg.mxu0
    %159 = vmatprep.subr.bf16.mxu0 0
    %160 = vmatpush1.bf16.msra.mxu0 0
    %161 = vmatprep.subr.bf16.mxu0 0
    %162 = vmatpush1.bf16.msra.mxu0 0
    %163 = vmatprep.subr.bf16.mxu0 0
    %164 = vmatpush1.bf16.msra.mxu0 0
    %165 = vmatprep.subr.bf16.mxu0 0
    %166 = vmatpush1.bf16.msra.mxu0 0
    %167 = vmatprep.subr.bf16.mxu0 0
    %168 = vmatpush1.bf16.msra.mxu0 0
    %169 = vmatprep.subr.bf16.mxu0 0
    %170 = vmatpush1.bf16.msra.mxu0 0
    %171 = vmatprep.subr.bf16.mxu0 %v116
    %172 = vmatpush1.bf16.msra.mxu0 %v113
    %173 = vmatprep.subr.bf16.mxu0 %v92
    %174 = vmatpush1.bf16.msra.mxu0 %v91
    %175 = vmatprep.subr.bf16.mxu0 0
    %176 = vmatpush2.bf16.msra.mxu0 0
    %177 = vmatprep.subr.bf16.mxu0 0
    %178 = vmatpush2.bf16.msra.mxu0 0
    %179 = vmatprep.subr.bf16.mxu0 0
    %180 = vmatpush2.bf16.msra.mxu0 0
    %181 = vmatprep.subr.bf16.mxu0 0
    %182 = vmatpush2.bf16.msra.mxu0 0
    %183 = vmatprep.subr.bf16.mxu0 0
    %184 = vmatpush2.bf16.msra.mxu0 0
    %185 = vmatprep.subr.bf16.mxu0 0
    %186 = vmatpush2.bf16.msra.mxu0 0
    %187 = vmatprep.subr.bf16.mxu0 0
    %188 = vmatpush2.bf16.msra.mxu0 0
    %189 = vmatprep.subr.bf16.mxu0 0
    %190 = vmatpush2.bf16.msra.mxu0 0
    %191 = vmatprep.mubr.bf16.mxu0 0
    %192 = vmatmul.mubr.bf16.gmra.mxu0 %v103
    %v193 = vpop.f32.mrf.mxu0
    %v194 = vadd.f32 %v62, %v193
    %v195 = vpop.f32.mrf.mxu0
    %v196 = vadd.f32 %v66, %v195
    %v197 = vpop.f32.mrf.mxu0
    %v198 = vpop.f32.mrf.mxu0
    %199 = vdwg.mxu0
    %v200 = vmax.f32 %v153, 0.0
    %v201 = vmax.f32 %v155, 0.0
    %v202 = vmax.f32 %v194, 0.0
    %v203 = vmax.f32 %v196, 0.0
    %v204 = vld [vmem:[#allocation2] sm:$0xff]
    %v205 = vld [vmem:[#allocation2 + $0x10] sm:$0xff]
    %v206 = vld [vmem:[#allocation2 + $0x20] sm:$0xff]
    %v207 = vld [vmem:[#allocation2 + $0x30] sm:$0xff]
    %v208 = vld [vmem:[#allocation2 + $0x40] sm:$0xff]
    %v209 = vld [vmem:[#allocation2 + $0x50] sm:$0xff]
    %v210 = vld [vmem:[#allocation2 + $0x60] sm:$0xff]
    %v211 = vld [vmem:[#allocation2 + $0x70] sm:$0xff]
    %v212 = vld [vmem:[#allocation2 + $0x80] sm:$0xff]
    %v213 = vld [vmem:[#allocation2 + $0x90] sm:$0xff]
    %v214 = vld [vmem:[#allocation2 + $0xa0] sm:$0xff]
    %v215 = vld [vmem:[#allocation2 + $0xb0] sm:$0xff]
    %v216 = vld [vmem:[#allocation2 + $0xc0] sm:$0xff]
    %v217 = vld [vmem:[#allocation2 + $0xd0] sm:$0xff]
    %v218 = vld [vmem:[#allocation2 + $0xe0] sm:$0xff]
    %v219 = vld [vmem:[#allocation2 + $0xf0] sm:$0xff]
    %v220 = vld [vmem:[#allocation2 + $0x100] sm:$0xff]
    %v221 = vld [vmem:[#allocation2 + $0x110] sm:$0xff]
    %v222 = vld [vmem:[#allocation2 + $0x120] sm:$0xff]
    %v223 = vld [vmem:[#allocation2 + $0x130] sm:$0xff]
    %v224 = vld [vmem:[#allocation2 + $0x140] sm:$0xff]
    %v225 = vld [vmem:[#allocation2 + $0x150] sm:$0xff]
    %v226 = vld [vmem:[#allocation2 + $0x160] sm:$0xff]
    %v227 = vld [vmem:[#allocation2 + $0x170] sm:$0xff]
    %v228 = vld [vmem:[#allocation2 + $0x180] sm:$0xff]
    %v229 = vld [vmem:[#allocation2 + $0x190] sm:$0xff]
    %v230 = vld [vmem:[#allocation2 + $0x1a0] sm:$0xff]
    %v231 = vld [vmem:[#allocation2 + $0x1b0] sm:$0xff]
    %v232 = vld [vmem:[#allocation2 + $0x1c0] sm:$0xff]
    %v233 = vld [vmem:[#allocation2 + $0x1d0] sm:$0xff]
    %v234 = vld [vmem:[#allocation2 + $0x1e0] sm:$0xff]
    %v235 = vld [vmem:[#allocation2 + $0x1f0] sm:$0xff]
    %v236 = vpack.c.bf16 %v200, %v200
    %v237 = vpack.c.bf16 %v201, %v201
    %v238 = vld [vmem:[%s4] sm:$0x3]
    %v240 = vlaneseq
    %v241 = vshrl.u32 %v240, 7
    %v242 = vsub.s32 0, %v241
    %v243 = vrot.slane %v238, %v242
    %v244 = vlaneseq
    %v245 = vshrl.u32 %v244, 7
    %v246 = vsub.s32 1, %v245
    %v247 = vrot.slane %v238, %v246
    %v282 = vunpack.c.l.b16 %v204
    %v283 = vunpack.c.h.b16 %v204
    %v284 = vunpack.c.l.b16 %v205
    %v285 = vunpack.c.h.b16 %v205
    %v286 = vunpack.c.l.b16 %v206
    %v287 = vunpack.c.h.b16 %v206
    %v288 = vunpack.c.l.b16 %v207
    %v289 = vunpack.c.h.b16 %v207
    %v290 = vunpack.c.l.b16 %v208
    %v291 = vunpack.c.h.b16 %v208
    %v292 = vunpack.c.l.b16 %v209
    %v293 = vunpack.c.h.b16 %v209
    %v294 = vunpack.c.l.b16 %v210
    %v295 = vunpack.c.h.b16 %v210
    %v296 = vunpack.c.l.b16 %v211
    %v297 = vunpack.c.h.b16 %v211
    %v298 = vunpack.c.l.b16 %v212
    %v299 = vunpack.c.h.b16 %v212
    %v300 = vunpack.c.l.b16 %v213
    %v301 = vunpack.c.h.b16 %v213
    %v302 = vunpack.c.l.b16 %v214
    %v303 = vunpack.c.h.b16 %v214
    %v304 = vunpack.c.l.b16 %v215
    %v305 = vunpack.c.h.b16 %v215
    %v306 = vunpack.c.l.b16 %v216
    %v307 = vunpack.c.h.b16 %v216
    %v308 = vunpack.c.l.b16 %v217
    %v309 = vunpack.c.h.b16 %v217
    %v310 = vunpack.c.l.b16 %v218
    %v311 = vunpack.c.h.b16 %v218
    %v312 = vunpack.c.l.b16 %v219
    %v313 = vunpack.c.h.b16 %v219
    %v314 = vunpack.c.l.b16 %v220
    %v315 = vunpack.c.h.b16 %v220
    %v316 = vunpack.c.l.b16 %v221
    %v317 = vunpack.c.h.b16 %v221
    %v318 = vunpack.c.l.b16 %v222
    %v319 = vunpack.c.h.b16 %v222
    %v320 = vunpack.c.l.b16 %v223
    %v321 = vunpack.c.h.b16 %v223
    %v322 = vunpack.c.l.b16 %v224
    %v323 = vunpack.c.h.b16 %v224
    %v324 = vunpack.c.l.b16 %v225
    %v325 = vunpack.c.h.b16 %v225
    %v326 = vunpack.c.l.b16 %v226
    %v327 = vunpack.c.h.b16 %v226
    %v328 = vunpack.c.l.b16 %v227
    %v329 = vunpack.c.h.b16 %v227
    %v330 = vunpack.c.l.b16 %v228
    %v331 = vunpack.c.h.b16 %v228
    %v332 = vunpack.c.l.b16 %v229
    %v333 = vunpack.c.h.b16 %v229
    %v334 = vunpack.c.l.b16 %v230
    %v335 = vunpack.c.h.b16 %v230
    %v336 = vunpack.c.l.b16 %v231
    %v337 = vunpack.c.h.b16 %v231
    %v338 = vunpack.c.l.b16 %v232
    %v339 = vunpack.c.h.b16 %v232
    %v340 = vunpack.c.l.b16 %v233
    %v341 = vunpack.c.h.b16 %v233
    %v342 = vunpack.c.l.b16 %v234
    %v343 = vunpack.c.h.b16 %v234
    %v344 = vunpack.c.l.b16 %v235
    %v345 = vunpack.c.h.b16 %v235
    %v346 = vpack.c.b16 %v284, %v282
    %v347 = vpack.c.b16 %v285, %v283
    %v348 = vpack.c.b16 %v288, %v286
    %v349 = vpack.c.b16 %v289, %v287
    %v350 = vpack.c.b16 %v292, %v290
    %v351 = vpack.c.b16 %v293, %v291
    %v352 = vpack.c.b16 %v296, %v294
    %v353 = vpack.c.b16 %v297, %v295
    %v354 = vpack.c.b16 %v300, %v298
    %v355 = vpack.c.b16 %v301, %v299
    %v356 = vpack.c.b16 %v304, %v302
    %v357 = vpack.c.b16 %v305, %v303
    %v358 = vpack.c.b16 %v308, %v306
    %v359 = vpack.c.b16 %v309, %v307
    %v360 = vpack.c.b16 %v312, %v310
    %v361 = vpack.c.b16 %v313, %v311
    %v362 = vpack.c.b16 %v316, %v314
    %v363 = vpack.c.b16 %v317, %v315
    %v364 = vpack.c.b16 %v320, %v318
    %v365 = vpack.c.b16 %v321, %v319
    %v366 = vpack.c.b16 %v324, %v322
    %v367 = vpack.c.b16 %v325, %v323
    %v368 = vpack.c.b16 %v328, %v326
    %v369 = vpack.c.b16 %v329, %v327
    %v370 = vpack.c.b16 %v332, %v330
    %v371 = vpack.c.b16 %v333, %v331
    %v372 = vpack.c.b16 %v336, %v334
    %v373 = vpack.c.b16 %v337, %v335
    %v374 = vpack.c.b16 %v340, %v338
    %v375 = vpack.c.b16 %v341, %v339
    %v376 = vpack.c.b16 %v344, %v342
    %v377 = vpack.c.b16 %v345, %v343
    %410 = vmatprep.subr.bf16.mxu0 %v361
    %411 = vmatpush1.bf16.msra.mxu0 %v360
    %412 = vmatprep.subr.bf16.mxu0 %v359
    %413 = vmatpush1.bf16.msra.mxu0 %v358
    %414 = vmatprep.subr.bf16.mxu0 %v357
    %415 = vmatpush1.bf16.msra.mxu0 %v356
    %416 = vmatprep.subr.bf16.mxu0 %v355
    %417 = vmatpush1.bf16.msra.mxu0 %v354
    %418 = vmatprep.subr.bf16.mxu0 %v353
    %419 = vmatpush1.bf16.msra.mxu0 %v352
    %420 = vmatprep.subr.bf16.mxu0 %v351
    %421 = vmatpush1.bf16.msra.mxu0 %v350
    %422 = vmatprep.subr.bf16.mxu0 %v349
    %423 = vmatpush1.bf16.msra.mxu0 %v348
    %424 = vmatprep.subr.bf16.mxu0 %v347
    %425 = vmatpush1.bf16.msra.mxu0 %v346
    %426 = vmatprep.subr.bf16.mxu0 %v377
    %427 = vmatpush2.bf16.msra.mxu0 %v376
    %428 = vmatprep.subr.bf16.mxu0 %v375
    %429 = vmatpush2.bf16.msra.mxu0 %v374
    %430 = vmatprep.subr.bf16.mxu0 %v373
    %431 = vmatpush2.bf16.msra.mxu0 %v372
    %432 = vmatprep.subr.bf16.mxu0 %v371
    %433 = vmatpush2.bf16.msra.mxu0 %v370
    %434 = vmatprep.subr.bf16.mxu0 %v369
    %435 = vmatpush2.bf16.msra.mxu0 %v368
    %436 = vmatprep.subr.bf16.mxu0 %v367
    %437 = vmatpush2.bf16.msra.mxu0 %v366
    %438 = vmatprep.subr.bf16.mxu0 %v365
    %439 = vmatpush2.bf16.msra.mxu0 %v364
    %440 = vmatprep.subr.bf16.mxu0 %v363
    %441 = vmatpush2.bf16.msra.mxu0 %v362
    %442 = vmatprep.mubr.bf16.mxu0 %v237
    %443 = vmatmul.mubr.bf16.gmra.mxu0 %v236
    %v444 = vpop.f32.mrf.mxu0
    %v445 = vadd.f32 %v243, %v444
    %v446 = vpop.f32.mrf.mxu0
    %v447 = vadd.f32 %v247, %v446
    %v448 = vpop.f32.mrf.mxu0
    %v449 = vpop.f32.mrf.mxu0
    %450 = vdwg.mxu0
    %v451 = vmax.f32 %v445, 0.0
    %v452 = vmax.f32 %v447, 0.0
    %v453 = vld [vmem:[#allocation2 + $0x8] sm:$0xff]
    %v454 = vld [vmem:[#allocation2 + $0x18] sm:$0xff]
    %v455 = vld [vmem:[#allocation2 + $0x28] sm:$0xff]
    %v456 = vld [vmem:[#allocation2 + $0x38] sm:$0xff]
    %v457 = vld [vmem:[#allocation2 + $0x48] sm:$0xff]
    %v458 = vld [vmem:[#allocation2 + $0x58] sm:$0xff]
    %v459 = vld [vmem:[#allocation2 + $0x68] sm:$0xff]
    %v460 = vld [vmem:[#allocation2 + $0x78] sm:$0xff]
    %v461 = vld [vmem:[#allocation2 + $0x88] sm:$0xff]
    %v462 = vld [vmem:[#allocation2 + $0x98] sm:$0xff]
    %v463 = vld [vmem:[#allocation2 + $0xa8] sm:$0xff]
    %v464 = vld [vmem:[#allocation2 + $0xb8] sm:$0xff]
    %v465 = vld [vmem:[#allocation2 + $0xc8] sm:$0xff]
    %v466 = vld [vmem:[#allocation2 + $0xd8] sm:$0xff]
    %v467 = vld [vmem:[#allocation2 + $0xe8] sm:$0xff]
    %v468 = vld [vmem:[#allocation2 + $0xf8] sm:$0xff]
    %v469 = vld [vmem:[#allocation2 + $0x108] sm:$0xff]
    %v470 = vld [vmem:[#allocation2 + $0x118] sm:$0xff]
    %v471 = vld [vmem:[#allocation2 + $0x128] sm:$0xff]
    %v472 = vld [vmem:[#allocation2 + $0x138] sm:$0xff]
    %v473 = vld [vmem:[#allocation2 + $0x148] sm:$0xff]
    %v474 = vld [vmem:[#allocation2 + $0x158] sm:$0xff]
    %v475 = vld [vmem:[#allocation2 + $0x168] sm:$0xff]
    %v476 = vld [vmem:[#allocation2 + $0x178] sm:$0xff]
    %v477 = vld [vmem:[#allocation2 + $0x188] sm:$0xff]
    %v478 = vld [vmem:[#allocation2 + $0x198] sm:$0xff]
    %v479 = vld [vmem:[#allocation2 + $0x1a8] sm:$0xff]
    %v480 = vld [vmem:[#allocation2 + $0x1b8] sm:$0xff]
    %v481 = vld [vmem:[#allocation2 + $0x1c8] sm:$0xff]
    %v482 = vld [vmem:[#allocation2 + $0x1d8] sm:$0xff]
    %v483 = vld [vmem:[#allocation2 + $0x1e8] sm:$0xff]
    %v484 = vld [vmem:[#allocation2 + $0x1f8] sm:$0xff]
    %v485 = vpack.c.bf16 %v202, %v202
    %v486 = vpack.c.bf16 %v203, %v203
    %v487 = vld [vmem:[%s4 + $0x2] sm:$0x3]
    %v489 = vlaneseq
    %v490 = vshrl.u32 %v489, 7
    %v491 = vsub.s32 0, %v490
    %v492 = vrot.slane %v487, %v491
    %v493 = vlaneseq
    %v494 = vshrl.u32 %v493, 7
    %v495 = vsub.s32 1, %v494
    %v496 = vrot.slane %v487, %v495
    %v531 = vunpack.c.l.b16 %v453
    %v532 = vunpack.c.h.b16 %v453
    %v533 = vunpack.c.l.b16 %v454
    %v534 = vunpack.c.h.b16 %v454
    %v535 = vunpack.c.l.b16 %v455
    %v536 = vunpack.c.h.b16 %v455
    %v537 = vunpack.c.l.b16 %v456
    %v538 = vunpack.c.h.b16 %v456
    %v539 = vunpack.c.l.b16 %v457
    %v540 = vunpack.c.h.b16 %v457
    %v541 = vunpack.c.l.b16 %v458
    %v542 = vunpack.c.h.b16 %v458
    %v543 = vunpack.c.l.b16 %v459
    %v544 = vunpack.c.h.b16 %v459
    %v545 = vunpack.c.l.b16 %v460
    %v546 = vunpack.c.h.b16 %v460
    %v547 = vunpack.c.l.b16 %v461
    %v548 = vunpack.c.h.b16 %v461
    %v549 = vunpack.c.l.b16 %v462
    %v550 = vunpack.c.h.b16 %v462
    %v551 = vunpack.c.l.b16 %v463
    %v552 = vunpack.c.h.b16 %v463
    %v553 = vunpack.c.l.b16 %v464
    %v554 = vunpack.c.h.b16 %v464
    %v555 = vunpack.c.l.b16 %v465
    %v556 = vunpack.c.h.b16 %v465
    %v557 = vunpack.c.l.b16 %v466
    %v558 = vunpack.c.h.b16 %v466
    %v559 = vunpack.c.l.b16 %v467
    %v560 = vunpack.c.h.b16 %v467
    %v561 = vunpack.c.l.b16 %v468
    %v562 = vunpack.c.h.b16 %v468
    %v563 = vunpack.c.l.b16 %v469
    %v564 = vunpack.c.h.b16 %v469
    %v565 = vunpack.c.l.b16 %v470
    %v566 = vunpack.c.h.b16 %v470
    %v567 = vunpack.c.l.b16 %v471
    %v568 = vunpack.c.h.b16 %v471
    %v569 = vunpack.c.l.b16 %v472
    %v570 = vunpack.c.h.b16 %v472
    %v571 = vunpack.c.l.b16 %v473
    %v572 = vunpack.c.h.b16 %v473
    %v573 = vunpack.c.l.b16 %v474
    %v574 = vunpack.c.h.b16 %v474
    %v575 = vunpack.c.l.b16 %v475
    %v576 = vunpack.c.h.b16 %v475
    %v577 = vunpack.c.l.b16 %v476
    %v578 = vunpack.c.h.b16 %v476
    %v579 = vunpack.c.l.b16 %v477
    %v580 = vunpack.c.h.b16 %v477
    %v581 = vunpack.c.l.b16 %v478
    %v582 = vunpack.c.h.b16 %v478
    %v583 = vunpack.c.l.b16 %v479
    %v584 = vunpack.c.h.b16 %v479
    %v585 = vunpack.c.l.b16 %v480
    %v586 = vunpack.c.h.b16 %v480
    %v587 = vunpack.c.l.b16 %v481
    %v588 = vunpack.c.h.b16 %v481
    %v589 = vunpack.c.l.b16 %v482
    %v590 = vunpack.c.h.b16 %v482
    %v591 = vunpack.c.l.b16 %v483
    %v592 = vunpack.c.h.b16 %v483
    %v593 = vunpack.c.l.b16 %v484
    %v594 = vunpack.c.h.b16 %v484
    %v595 = vpack.c.b16 %v533, %v531
    %v596 = vpack.c.b16 %v534, %v532
    %v597 = vpack.c.b16 %v537, %v535
    %v598 = vpack.c.b16 %v538, %v536
    %v599 = vpack.c.b16 %v541, %v539
    %v600 = vpack.c.b16 %v542, %v540
    %v601 = vpack.c.b16 %v545, %v543
    %v602 = vpack.c.b16 %v546, %v544
    %v603 = vpack.c.b16 %v549, %v547
    %v604 = vpack.c.b16 %v550, %v548
    %v605 = vpack.c.b16 %v553, %v551
    %v606 = vpack.c.b16 %v554, %v552
    %v607 = vpack.c.b16 %v557, %v555
    %v608 = vpack.c.b16 %v558, %v556
    %v609 = vpack.c.b16 %v561, %v559
    %v610 = vpack.c.b16 %v562, %v560
    %v611 = vpack.c.b16 %v565, %v563
    %v612 = vpack.c.b16 %v566, %v564
    %v613 = vpack.c.b16 %v569, %v567
    %v614 = vpack.c.b16 %v570, %v568
    %v615 = vpack.c.b16 %v573, %v571
    %v616 = vpack.c.b16 %v574, %v572
    %v617 = vpack.c.b16 %v577, %v575
    %v618 = vpack.c.b16 %v578, %v576
    %v619 = vpack.c.b16 %v581, %v579
    %v620 = vpack.c.b16 %v582, %v580
    %v621 = vpack.c.b16 %v585, %v583
    %v622 = vpack.c.b16 %v586, %v584
    %v623 = vpack.c.b16 %v589, %v587
    %v624 = vpack.c.b16 %v590, %v588
    %v625 = vpack.c.b16 %v593, %v591
    %v626 = vpack.c.b16 %v594, %v592
    %659 = vmatprep.subr.bf16.mxu0 %v610
    %660 = vmatpush1.bf16.msra.mxu0 %v609
    %661 = vmatprep.subr.bf16.mxu0 %v608
    %662 = vmatpush1.bf16.msra.mxu0 %v607
    %663 = vmatprep.subr.bf16.mxu0 %v606
    %664 = vmatpush1.bf16.msra.mxu0 %v605
    %665 = vmatprep.subr.bf16.mxu0 %v604
    %666 = vmatpush1.bf16.msra.mxu0 %v603
    %667 = vmatprep.subr.bf16.mxu0 %v602
    %668 = vmatpush1.bf16.msra.mxu0 %v601
    %669 = vmatprep.subr.bf16.mxu0 %v600
    %670 = vmatpush1.bf16.msra.mxu0 %v599
    %671 = vmatprep.subr.bf16.mxu0 %v598
    %672 = vmatpush1.bf16.msra.mxu0 %v597
    %673 = vmatprep.subr.bf16.mxu0 %v596
    %674 = vmatpush1.bf16.msra.mxu0 %v595
    %675 = vmatprep.subr.bf16.mxu0 %v626
    %676 = vmatpush2.bf16.msra.mxu0 %v625
    %677 = vmatprep.subr.bf16.mxu0 %v624
    %678 = vmatpush2.bf16.msra.mxu0 %v623
    %679 = vmatprep.subr.bf16.mxu0 %v622
    %680 = vmatpush2.bf16.msra.mxu0 %v621
    %681 = vmatprep.subr.bf16.mxu0 %v620
    %682 = vmatpush2.bf16.msra.mxu0 %v619
    %683 = vmatprep.subr.bf16.mxu0 %v618
    %684 = vmatpush2.bf16.msra.mxu0 %v617
    %685 = vmatprep.subr.bf16.mxu0 %v616
    %686 = vmatpush2.bf16.msra.mxu0 %v615
    %687 = vmatprep.subr.bf16.mxu0 %v614
    %688 = vmatpush2.bf16.msra.mxu0 %v613
    %689 = vmatprep.subr.bf16.mxu0 %v612
    %690 = vmatpush2.bf16.msra.mxu0 %v611
    %691 = vmatprep.mubr.bf16.mxu0 %v486
    %692 = vmatmul.mubr.bf16.gmra.mxu0 %v485
    %v693 = vpop.f32.mrf.mxu0
    %v694 = vadd.f32 %v492, %v693
    %v695 = vpop.f32.mrf.mxu0
    %v696 = vadd.f32 %v496, %v695
    %v697 = vpop.f32.mrf.mxu0
    %v698 = vpop.f32.mrf.mxu0
    %699 = vdwg.mxu0
    %v700 = vmax.f32 %v694, 0.0
    %v701 = vmax.f32 %v696, 0.0
    %v702 = vld [vmem:[%s5] sm:$0xf]
    %v703 = vld [vmem:[%s5 + $0x4] sm:$0xf]
    %v704 = vld [vmem:[%s5 + $0x8] sm:$0xf]
    %v705 = vld [vmem:[%s5 + $0xc] sm:$0xf]
    %v706 = vld [vmem:[%s5 + $0x10] sm:$0xf]
    %v707 = vld [vmem:[%s5 + $0x14] sm:$0xf]
    %v708 = vld [vmem:[%s5 + $0x18] sm:$0xf]
    %v709 = vld [vmem:[%s5 + $0x1c] sm:$0xf]
    %v710 = vld [vmem:[%s5 + $0x20] sm:$0xf]
    %v711 = vld [vmem:[%s5 + $0x24] sm:$0xf]
    %v712 = vld [vmem:[%s5 + $0x28] sm:$0xf]
    %v713 = vld [vmem:[%s5 + $0x2c] sm:$0xf]
    %v714 = vld [vmem:[%s5 + $0x30] sm:$0xf]
    %v715 = vld [vmem:[%s5 + $0x34] sm:$0xf]
    %v716 = vld [vmem:[%s5 + $0x38] sm:$0xf]
    %v717 = vld [vmem:[%s5 + $0x3c] sm:$0xf]
    %v718 = vld [vmem:[%s5 + $0x40] sm:$0xf]
    %v719 = vld [vmem:[%s5 + $0x44] sm:$0xf]
    %v720 = vld [vmem:[%s5 + $0x48] sm:$0xf]
    %v721 = vld [vmem:[%s5 + $0x4c] sm:$0xf]
    %v722 = vld [vmem:[%s5 + $0x50] sm:$0xf]
    %v723 = vld [vmem:[%s5 + $0x54] sm:$0xf]
    %v724 = vld [vmem:[%s5 + $0x58] sm:$0xf]
    %v725 = vld [vmem:[%s5 + $0x5c] sm:$0xf]
    %v726 = vld [vmem:[%s5 + $0x60] sm:$0xf]
    %v727 = vld [vmem:[%s5 + $0x64] sm:$0xf]
    %v728 = vld [vmem:[%s5 + $0x68] sm:$0xf]
    %v729 = vld [vmem:[%s5 + $0x6c] sm:$0xf]
    %v730 = vld [vmem:[%s5 + $0x70] sm:$0xf]
    %v731 = vld [vmem:[%s5 + $0x74] sm:$0xf]
    %v732 = vld [vmem:[%s5 + $0x78] sm:$0xf]
    %v733 = vld [vmem:[%s5 + $0x7c] sm:$0xf]
    %v734 = vld [vmem:[%s5 + $0x80] sm:$0xf]
    %v735 = vld [vmem:[%s5 + $0x84] sm:$0xf]
    %v736 = vld [vmem:[%s5 + $0x88] sm:$0xf]
    %v737 = vld [vmem:[%s5 + $0x8c] sm:$0xf]
    %v738 = vld [vmem:[%s5 + $0x90] sm:$0xf]
    %v739 = vld [vmem:[%s5 + $0x94] sm:$0xf]
    %v740 = vld [vmem:[%s5 + $0x98] sm:$0xf]
    %v741 = vld [vmem:[%s5 + $0x9c] sm:$0xf]
    %v742 = vld [vmem:[%s5 + $0xa0] sm:$0xf]
    %v743 = vld [vmem:[%s5 + $0xa4] sm:$0xf]
    %v744 = vld [vmem:[%s5 + $0xa8] sm:$0xf]
    %v745 = vld [vmem:[%s5 + $0xac] sm:$0xf]
    %v746 = vld [vmem:[%s5 + $0xb0] sm:$0xf]
    %v747 = vld [vmem:[%s5 + $0xb4] sm:$0xf]
    %v748 = vld [vmem:[%s5 + $0xb8] sm:$0xf]
    %v749 = vld [vmem:[%s5 + $0xbc] sm:$0xf]
    %v750 = vld [vmem:[%s5 + $0xc0] sm:$0xf]
    %v751 = vld [vmem:[%s5 + $0xc4] sm:$0xf]
    %v752 = vld [vmem:[%s5 + $0xc8] sm:$0xf]
    %v753 = vld [vmem:[%s5 + $0xcc] sm:$0xf]
    %v754 = vld [vmem:[%s5 + $0xd0] sm:$0xf]
    %v755 = vld [vmem:[%s5 + $0xd4] sm:$0xf]
    %v756 = vld [vmem:[%s5 + $0xd8] sm:$0xf]
    %v757 = vld [vmem:[%s5 + $0xdc] sm:$0xf]
    %v758 = vld [vmem:[%s5 + $0xe0] sm:$0xf]
    %v759 = vld [vmem:[%s5 + $0xe4] sm:$0xf]
    %v760 = vld [vmem:[%s5 + $0xe8] sm:$0xf]
    %v761 = vld [vmem:[%s5 + $0xec] sm:$0xf]
    %v762 = vld [vmem:[%s5 + $0xf0] sm:$0xf]
    %v763 = vld [vmem:[%s5 + $0xf4] sm:$0xf]
    %v764 = vld [vmem:[%s5 + $0xf8] sm:$0xf]
    %v765 = vld [vmem:[%s5 + $0xfc] sm:$0xf]
    %v766 = vpack.c.bf16 %v451, %v451
    %v767 = vpack.c.bf16 %v452, %v452
    %v768 = vpack.c.bf16 %v700, %v700
    %v769 = vpack.c.bf16 %v701, %v701
    %v770 = vld [vmem:[%s6] sm:$0x1]
    %v772 = vlaneseq
    %v773 = vshrl.u32 %v772, 7
    %v774 = vsub.s32 0, %v773
    %v775 = vrot.slane %v770, %v774
    %v841 = vunpack.c.l.b16 %v702
    %v842 = vunpack.c.l.b16 %v703
    %v843 = vunpack.c.l.b16 %v704
    %v844 = vunpack.c.l.b16 %v705
    %v845 = vunpack.c.l.b16 %v706
    %v846 = vunpack.c.l.b16 %v707
    %v847 = vunpack.c.l.b16 %v708
    %v848 = vunpack.c.l.b16 %v709
    %v849 = vunpack.c.l.b16 %v710
    %v850 = vunpack.c.l.b16 %v711
    %v851 = vunpack.c.l.b16 %v712
    %v852 = vunpack.c.l.b16 %v713
    %v853 = vunpack.c.l.b16 %v714
    %v854 = vunpack.c.l.b16 %v715
    %v855 = vunpack.c.l.b16 %v716
    %v856 = vunpack.c.l.b16 %v717
    %v857 = vunpack.c.l.b16 %v718
    %v858 = vunpack.c.l.b16 %v719
    %v859 = vunpack.c.l.b16 %v720
    %v860 = vunpack.c.l.b16 %v721
    %v861 = vunpack.c.l.b16 %v722
    %v862 = vunpack.c.l.b16 %v723
    %v863 = vunpack.c.l.b16 %v724
    %v864 = vunpack.c.l.b16 %v725
    %v865 = vunpack.c.l.b16 %v726
    %v866 = vunpack.c.l.b16 %v727
    %v867 = vunpack.c.l.b16 %v728
    %v868 = vunpack.c.l.b16 %v729
    %v869 = vunpack.c.l.b16 %v730
    %v870 = vunpack.c.l.b16 %v731
    %v871 = vunpack.c.l.b16 %v732
    %v872 = vunpack.c.l.b16 %v733
    %v873 = vunpack.c.l.b16 %v734
    %v874 = vunpack.c.l.b16 %v735
    %v875 = vunpack.c.l.b16 %v736
    %v876 = vunpack.c.l.b16 %v737
    %v877 = vunpack.c.l.b16 %v738
    %v878 = vunpack.c.l.b16 %v739
    %v879 = vunpack.c.l.b16 %v740
    %v880 = vunpack.c.l.b16 %v741
    %v881 = vunpack.c.l.b16 %v742
    %v882 = vunpack.c.l.b16 %v743
    %v883 = vunpack.c.l.b16 %v744
    %v884 = vunpack.c.l.b16 %v745
    %v885 = vunpack.c.l.b16 %v746
    %v886 = vunpack.c.l.b16 %v747
    %v887 = vunpack.c.l.b16 %v748
    %v888 = vunpack.c.l.b16 %v749
    %v889 = vunpack.c.l.b16 %v750
    %v890 = vunpack.c.l.b16 %v751
    %v891 = vunpack.c.l.b16 %v752
    %v892 = vunpack.c.l.b16 %v753
    %v893 = vunpack.c.l.b16 %v754
    %v894 = vunpack.c.l.b16 %v755
    %v895 = vunpack.c.l.b16 %v756
    %v896 = vunpack.c.l.b16 %v757
    %v897 = vunpack.c.l.b16 %v758
    %v898 = vunpack.c.l.b16 %v759
    %v899 = vunpack.c.l.b16 %v760
    %v900 = vunpack.c.l.b16 %v761
    %v901 = vunpack.c.l.b16 %v762
    %v902 = vunpack.c.l.b16 %v763
    %v903 = vunpack.c.l.b16 %v764
    %v904 = vunpack.c.l.b16 %v765
    %v905 = vpack.c.b16 %v842, %v841
    %v906 = vpack.c.b16 %v844, %v843
    %v907 = vpack.c.b16 %v846, %v845
    %v908 = vpack.c.b16 %v848, %v847
    %v909 = vpack.c.b16 %v850, %v849
    %v910 = vpack.c.b16 %v852, %v851
    %v911 = vpack.c.b16 %v854, %v853
    %v912 = vpack.c.b16 %v856, %v855
    %v913 = vpack.c.b16 %v858, %v857
    %v914 = vpack.c.b16 %v860, %v859
    %v915 = vpack.c.b16 %v862, %v861
    %v916 = vpack.c.b16 %v864, %v863
    %v917 = vpack.c.b16 %v866, %v865
    %v918 = vpack.c.b16 %v868, %v867
    %v919 = vpack.c.b16 %v870, %v869
    %v920 = vpack.c.b16 %v872, %v871
    %v921 = vpack.c.b16 %v874, %v873
    %v922 = vpack.c.b16 %v876, %v875
    %v923 = vpack.c.b16 %v878, %v877
    %v924 = vpack.c.b16 %v880, %v879
    %v925 = vpack.c.b16 %v882, %v881
    %v926 = vpack.c.b16 %v884, %v883
    %v927 = vpack.c.b16 %v886, %v885
    %v928 = vpack.c.b16 %v888, %v887
    %v929 = vpack.c.b16 %v890, %v889
    %v930 = vpack.c.b16 %v892, %v891
    %v931 = vpack.c.b16 %v894, %v893
    %v932 = vpack.c.b16 %v896, %v895
    %v933 = vpack.c.b16 %v898, %v897
    %v934 = vpack.c.b16 %v900, %v899
    %v935 = vpack.c.b16 %v902, %v901
    %v936 = vpack.c.b16 %v904, %v903
    %969 = vmatprep.subr.bf16.mxu0 0
    %970 = vmatpush1.bf16.msra.mxu0 %v912
    %971 = vmatprep.subr.bf16.mxu0 0
    %972 = vmatpush1.bf16.msra.mxu0 %v911
    %973 = vmatprep.subr.bf16.mxu0 0
    %974 = vmatpush1.bf16.msra.mxu0 %v910
    %975 = vmatprep.subr.bf16.mxu0 0
    %976 = vmatpush1.bf16.msra.mxu0 %v909
    %977 = vmatprep.subr.bf16.mxu0 0
    %978 = vmatpush1.bf16.msra.mxu0 %v908
    %979 = vmatprep.subr.bf16.mxu0 0
    %980 = vmatpush1.bf16.msra.mxu0 %v907
    %981 = vmatprep.subr.bf16.mxu0 0
    %982 = vmatpush1.bf16.msra.mxu0 %v906
    %983 = vmatprep.subr.bf16.mxu0 0
    %984 = vmatpush1.bf16.msra.mxu0 %v905
    %985 = vmatprep.subr.bf16.mxu0 0
    %986 = vmatpush2.bf16.msra.mxu0 %v920
    %987 = vmatprep.subr.bf16.mxu0 0
    %988 = vmatpush2.bf16.msra.mxu0 %v919
    %989 = vmatprep.subr.bf16.mxu0 0
    %990 = vmatpush2.bf16.msra.mxu0 %v918
    %991 = vmatprep.subr.bf16.mxu0 0
    %992 = vmatpush2.bf16.msra.mxu0 %v917
    %993 = vmatprep.subr.bf16.mxu0 0
    %994 = vmatpush2.bf16.msra.mxu0 %v916
    %995 = vmatprep.subr.bf16.mxu0 0
    %996 = vmatpush2.bf16.msra.mxu0 %v915
    %997 = vmatprep.subr.bf16.mxu0 0
    %998 = vmatpush2.bf16.msra.mxu0 %v914
    %999 = vmatprep.subr.bf16.mxu0 0
    %1000 = vmatpush2.bf16.msra.mxu0 %v913
    %1001 = vmatprep.mubr.bf16.mxu0 %v767
    %1002 = vmatmul.mubr.bf16.gmra.mxu0 %v766
    %v1003 = vpop.f32.mrf.mxu0
    %v1004 = vadd.f32 %v775, %v1003
    %v1005 = vpop.f32.mrf.mxu0
    %v1006 = vpop.f32.mrf.mxu0
    %v1007 = vpop.f32.mrf.mxu0
    %1008 = vdwg.mxu0
    %1009 = vmatprep.subr.bf16.mxu0 0
    %1010 = vmatpush1.bf16.msra.mxu0 %v928
    %1011 = vmatprep.subr.bf16.mxu0 0
    %1012 = vmatpush1.bf16.msra.mxu0 %v927
    %1013 = vmatprep.subr.bf16.mxu0 0
    %1014 = vmatpush1.bf16.msra.mxu0 %v926
    %1015 = vmatprep.subr.bf16.mxu0 0
    %1016 = vmatpush1.bf16.msra.mxu0 %v925
    %1017 = vmatprep.subr.bf16.mxu0 0
    %1018 = vmatpush1.bf16.msra.mxu0 %v924
    %1019 = vmatprep.subr.bf16.mxu0 0
    %1020 = vmatpush1.bf16.msra.mxu0 %v923
    %1021 = vmatprep.subr.bf16.mxu0 0
    %1022 = vmatpush1.bf16.msra.mxu0 %v922
    %1023 = vmatprep.subr.bf16.mxu0 0
    %1024 = vmatpush1.bf16.msra.mxu0 %v921
    %1025 = vmatprep.subr.bf16.mxu0 0
    %1026 = vmatpush2.bf16.msra.mxu0 %v936
    %1027 = vmatprep.subr.bf16.mxu0 0
    %1028 = vmatpush2.bf16.msra.mxu0 %v935
    %1029 = vmatprep.subr.bf16.mxu0 0
    %1030 = vmatpush2.bf16.msra.mxu0 %v934
    %1031 = vmatprep.subr.bf16.mxu0 0
    %1032 = vmatpush2.bf16.msra.mxu0 %v933
    %1033 = vmatprep.subr.bf16.mxu0 0
    %1034 = vmatpush2.bf16.msra.mxu0 %v932
    %1035 = vmatprep.subr.bf16.mxu0 0
    %1036 = vmatpush2.bf16.msra.mxu0 %v931
    %1037 = vmatprep.subr.bf16.mxu0 0
    %1038 = vmatpush2.bf16.msra.mxu0 %v930
    %1039 = vmatprep.subr.bf16.mxu0 0
    %1040 = vmatpush2.bf16.msra.mxu0 %v929
    %1041 = vmatprep.mubr.bf16.mxu0 %v769
    %1042 = vmatmul.mubr.bf16.gmra.mxu0 %v768
    %v1043 = vpop.f32.mrf.mxu0
    %v1044 = vadd.f32 %v1004, %v1043
    %v1045 = vpop.f32.mrf.mxu0
    %v1046 = vpop.f32.mrf.mxu0
    %v1047 = vpop.f32.mrf.mxu0
    %1048 = vdwg.mxu0
    %vm1049 = vcmask 15360
    %1050 = vst.msk [vmem:[%s7] sm:$0xff] %vm1049, %v1044
    // Predicated region
    $region34: #{critic_forward.1} parent=1 // pred_check
      _
    $region35: #{critic_forward.1} parent=1 // pred_check_branch
      %1052 = sbr.rel (0) target = $region37
    $region36: #{critic_forward.1} parent=1 // pred_region
      _
    $region37: #{critic_forward.1} parent=1 // pred_fallthru
      _
    // Predicated region
    $region38: #{critic_forward.1} parent=1 // pred_check
      _
    $region39: #{critic_forward.1} parent=1 // pred_check_branch
      %1054 = sbr.rel (0) target = $region41
    $region40: #{critic_forward.1} parent=1 // pred_region
      _
    $region41: #{critic_forward.1} parent=1 // pred_fallthru
      _
    %1055 = vsyncpa [#allocation3], 1

</llo_original>
